<compile_context>
chip_gen: v5e
topology: v5e:2x2
jax: 0.10.0
libtpu: 0.0.40
codegen_flags: <defaults>
</compile_context>

<pallas_src>
import functools

import jax
import jax.numpy as jnp
import numpy as np
from jax.experimental import pallas as pl
from jax.experimental.pallas import tpu as pltpu

_LANE = 128
_SUBLANE = 8
_KERNEL_TEMPS = 3  # working-width f32 temporaries live in the body (stitched x / term / acc)


def _cdiv(a: int, b: int) -> int:
    return -(-a // b)


def _round_up(a: int, b: int) -> int:
    return _cdiv(a, b) * b


_VMEM_BYTES_CACHE = None


def _physical_vmem_bytes() -> int:
    """Physical per-core VMEM; conservative 64 MiB (v7x-sized) fallback."""
    global _VMEM_BYTES_CACHE
    if _VMEM_BYTES_CACHE is None:
        vmem = None
        try:
            info = pltpu.get_tpu_info()
            for attr in ("vmem_capacity_bytes", "vmem_bytes", "vmem_size_bytes"):
                v = getattr(info, attr, None)
                if v:
                    vmem = int(v)
                    break
        except Exception:
            vmem = None
        _VMEM_BYTES_CACHE = vmem if vmem else 64 * 1024 * 1024
    return _VMEM_BYTES_CACHE


def _make_stencil_kernel(taps, inv_resol: float, w_out: int, with_halo: bool):
    """Valid 1-D stencil: out[:, j] = (sum_k taps[k] * x[:, j + k]) * inv_resol.

    Taps are compile-time constants: zero taps are dropped, +/-1 taps become
    add/sub, and the 1/resol scale is applied once at the end.  Shifts are
    static lane slices of the (already loaded) input tile, so arbitrary tile
    widths are fine and there is no roll wrap-around to reason about.
    """
    nonzero = [(k, float(t)) for k, t in enumerate(taps) if float(t) != 0.0]

    def _accumulate(x):
        acc = None
        for k, t in nonzero:
            term = x[:, k:k + w_out]
            if acc is None:
                if t == 1.0:
                    acc = term
                elif t == -1.0:
                    acc = -term
                else:
                    acc = t * term
            else:
                if t == 1.0:
                    acc = acc + term
                elif t == -1.0:
                    acc = acc - term
                else:
                    acc = acc + t * term
        if inv_resol != 1.0:
            acc = acc * inv_resol
        return acc

    if with_halo:
        def kernel(x_ref, halo_ref, o_ref, xc_ref):
            if not nonzero:  # degenerate all-zero filter
                o_ref[...] = jnp.zeros_like(o_ref)
                return
            # Stitch the main tile and its 128-lane halo into one scratch tile
            # (both stores are lane-aligned), then run the stencil over it.
            xc_ref[:, :w_out] = x_ref[...]
            xc_ref[:, w_out:] = halo_ref[...]
            o_ref[...] = _accumulate(xc_ref[...])
    else:
        def kernel(x_ref, o_ref):
            if not nonzero:
                o_ref[...] = jnp.zeros_like(o_ref)
                return
            o_ref[...] = _accumulate(x_ref[...])

    return kernel


@functools.partial(
    jax.jit, static_argnames=("taps", "inv_resol", "kernel_size", "lane_block")
)
def _conv1d_derivative_pallas(x2d, *, taps, inv_resol, kernel_size, lane_block=None):
    """x2d: (N, L) f32 -> (N, L - K + 1) f32 valid conv with baked taps, scaled."""
    N, L = x2d.shape
    K = int(kernel_size)
    L_out = L - K + 1
    assert L_out >= 1, "sequence shorter than the filter"

    n_nonzero = sum(1 for t in taps if float(t) != 0.0)

    # ---- VMEM budgeting (accounts for pipeline buffers + in-kernel temps) ----
    phys_vmem = _physical_vmem_bytes()
    vmem_limit = min(64 * 1024 * 1024, phys_vmem // 2)  # 32 MiB on v7x, 64 MiB on v5e/v6e
    budget = vmem_limit // 2                            # headroom for compiler scratch / spills

    def _row_cap(w_in, w_halo, w_out, w_work):
        # 2 double-buffered blocks per operand + ~3 working-width f32 temporaries.
        per_row = 4 * (2 * w_in + 2 * w_halo + 2 * w_out + _KERNEL_TEMPS * w_work)
        return max(_SUBLANE, (budget // per_row) // _SUBLANE * _SUBLANE)

    def _pick_tn(cap):
        # Keep >=2 row blocks whenever possible so the "parallel" grid axis can
        # shard across both v7x TensorCores; no artificial 1024 cap (big tiles
        # amortize the ~0.35us per-step cost on v5e/v6e's 128 MiB VMEM).
        two_blocks = _round_up(max(1, _cdiv(N, 2)), _SUBLANE)
        return max(_SUBLANE, min(cap, two_blocks, _round_up(N, _SUBLANE)))

    per_row_single = 4 * (2 * L + 2 * L_out + _KERNEL_TEMPS * L)
    fits_single = _SUBLANE * per_row_single <= budget
    use_l_tiling = (lane_block is not None and L_out > int(lane_block)) or not fits_single

    if not use_l_tiling:
        # One block spans the whole row (last block dims equal the full array dims).
        assert L >= L_out + K - 1
        tn = _pick_tn(_row_cap(L, 0, L_out, L))
        grid = (_cdiv(N, tn),)
        kernel = _make_stencil_kernel(taps, inv_resol, L_out, with_halo=False)
        in_specs = [pl.BlockSpec((tn, L), lambda i: (i, 0))]
        out_specs = pl.BlockSpec((tn, L_out), lambda i: (i, 0))
        operands = (x2d,)
        scratch_shapes = ()
        dim_sem = ("parallel",)
        bytes_accessed = 4 * N * (L + L_out)
    else:
        # Tile L with a one-lane-group halo: the input is passed twice, and the
        # second BlockSpec fetches the 128 input columns just past the output
        # tile so the stencil can reach K-1 columns beyond it.
        assert K - 1 <= _LANE, "128-lane halo supports kernel_size <= 129"
        if lane_block is not None:
            tl = max(_LANE, _round_up(int(lane_block), _LANE))
        else:
            tl = max(_LANE, min(8 * 1024, _round_up(_cdiv(L_out, 2), _LANE)))
        l_blocks = _cdiv(L_out, tl)
        hstep = tl // _LANE
        max_halo_blk = _cdiv(L, _LANE) - 1  # clamp keeps the halo block inside the array;
        # when the clamp actually triggers, the halo content is never used by a
        # valid output column (the main block already covers the stencil reach).

        tn = _pick_tn(_row_cap(tl, _LANE, tl, tl + _LANE))
        grid = (_cdiv(N, tn), l_blocks)
        kernel = _make_stencil_kernel(taps, inv_resol, tl, with_halo=True)
        in_specs = [
            pl.BlockSpec((tn, tl), lambda i, j: (i, j)),
            pl.BlockSpec(
                (tn, _LANE),
                lambda i, j: (i, jnp.minimum((j + 1) * hstep, max_halo_blk)),
            ),
        ]
        out_specs = pl.BlockSpec((tn, tl), lambda i, j: (i, j))
        operands = (x2d, x2d)
        scratch_shapes = (pltpu.VMEM((tn, tl + _LANE), jnp.float32),)
        dim_sem = ("parallel", "parallel")
        bytes_accessed = 4 * N * (L + l_blocks * _LANE + L_out)

    # TODO(synk): optionally pipeline_mode=pl.Buffered(3) on the input spec if a
    # profile ever shows exposed DMA at step boundaries (low single-digit %).
    return pl.pallas_call(
        kernel,
        out_shape=jax.ShapeDtypeStruct((N, L_out), jnp.float32),
        grid=grid,
        in_specs=in_specs,
        out_specs=out_specs,
        scratch_shapes=scratch_shapes,
        compiler_params=pltpu.CompilerParams(
            dimension_semantics=dim_sem,
            vmem_limit_bytes=vmem_limit,
        ),
        cost_estimate=pl.CostEstimate(
            flops=2 * max(n_nonzero, 1) * N * L_out,
            transcendentals=0,
            bytes_accessed=bytes_accessed,
        ),
    )(*operands)


class Conv1dDerivative:
    """JAX/Pallas port of the PyTorch Conv1dDerivative module (forward only)."""

    def __init__(self, DerFilter, resol, kernel_size=3, name=""):
        self.resol = float(resol)
        self.name = name
        self.input_channels = 1
        self.output_channels = 1
        self.kernel_size = int(kernel_size)
        self.padding = int((kernel_size - 1) / 2)  # parity with torch module; conv uses padding=0
        w = np.asarray(DerFilter, dtype=np.float32).reshape(
            self.output_channels, self.input_channels, self.kernel_size
        )
        self.weight = jnp.asarray(w)  # fixed, non-trainable
        # Compile-time constants (weights are declared requires_grad=False in torch).
        self._taps = tuple(float(t) for t in w.reshape(-1))
        self._inv_resol = 1.0 / self.resol
        self._lane_block = None  # optional L-tile override (testing / tuning)

    def __call__(self, x):
        # x: (N, 1, L)
        N, C, L = x.shape
        assert C == self.input_channels == 1
        x2d = x[:, 0, :]
        if x2d.dtype != jnp.float32:
            x2d = x2d.astype(jnp.float32)
        out2d = _conv1d_derivative_pallas(
            x2d,
            taps=self._taps,
            inv_resol=self._inv_resol,
            kernel_size=self.kernel_size,
            lane_block=self._lane_block,
        )
        return out2d[:, None, :]  # (N, 1, L - K + 1)


def _reference_conv1d_derivative(x, weight, resol):
    """Pure-JAX reference matching torch.nn.functional.conv1d (padding=0) / resol."""
    N, _, L = x.shape
    K = weight.shape[-1]
    L_out = L - K + 1
    w = weight.reshape(K)
    acc = jnp.zeros((N, L_out), dtype=jnp.float32)
    for k in range(K):
        acc = acc + w[k] * x[:, 0, k:k + L_out]
    return (acc / resol)[:, None, :]


if __name__ == "__main__":
    # Test 1: central-difference time filter (as used in the original repo).
    der_filter = [[[-1.0, 0.0, 1.0]]]  # (1, 1, 3)
    dt = 0.01
    resol = dt * 2.0
    mod_t = Conv1dDerivative(DerFilter=der_filter, resol=resol, kernel_size=3, name="partial_t")
    x = jax.random.normal(jax.random.PRNGKey(0), (2, 1, 16), dtype=jnp.float32)
    out = jax.block_until_ready(mod_t(x))
    ref = _reference_conv1d_derivative(x, mod_t.weight, resol)
    assert out.shape == (2, 1, 14), out.shape
    np.testing.assert_allclose(np.asarray(out), np.asarray(ref), rtol=1e-5, atol=1e-4)

    # Test 2: non-unit 5-tap filter exercising the general tap path, odd widths,
    # and multiple row blocks.
    der_filter2 = [[[1.0, -8.0, 0.0, 8.0, -1.0]]]  # (1, 1, 5)
    resol2 = 12.0 * 0.05
    mod_x = Conv1dDerivative(DerFilter=der_filter2, resol=resol2, kernel_size=5, name="dx")
    x2 = jax.random.normal(jax.random.PRNGKey(0), (10, 1, 200), dtype=jnp.float32)
    out2 = jax.block_until_ready(mod_x(x2))
    ref2 = _reference_conv1d_derivative(x2, mod_x.weight, resol2)
    assert out2.shape == (10, 1, 196), out2.shape
    np.testing.assert_allclose(np.asarray(out2), np.asarray(ref2), rtol=1e-5, atol=1e-4)

    # Test 3: force the L-tiled (128-lane halo) path at a small size to validate it.
    mod_h = Conv1dDerivative(DerFilter=der_filter2, resol=resol2, kernel_size=5, name="dx_tiled")
    mod_h._lane_block = 256  # 256-lane output tiles + 128-lane input halo
    x3 = jax.random.normal(jax.random.PRNGKey(0), (4, 1, 600), dtype=jnp.float32)
    out3 = jax.block_until_ready(mod_h(x3))
    ref3 = _reference_conv1d_derivative(x3, mod_h.weight, resol2)
    assert out3.shape == (4, 1, 596), out3.shape
    np.testing.assert_allclose(np.asarray(out3), np.asarray(ref3), rtol=1e-5, atol=1e-4)

    print("KERNEL_OK")
</pallas_src>

<mosaic_0001>
module attributes {stable_mosaic.version = 11 : i64} {
  func.func @kernel(%arg0: i32, %arg1: memref<8x16xf32, #tpu.memory_space<vmem>>, %arg2: memref<8x14xf32, #tpu.memory_space<vmem>>) attributes {dimension_semantics = [#tpu.dimension_semantics<parallel>], iteration_bounds = array<i64: 1>, scalar_prefetch = 0 : i64, scratch_operands = 0 : i64, tpu.core_type = #tpu.core_type<tc>, window_params = [{transform_indices = @transform_0, window_bounds = array<i64: 8, 16>}, {transform_indices = @transform_1, window_bounds = array<i64: 8, 14>}]} {
    %c0 = arith.constant 0 : index
    %c0_0 = arith.constant 0 : index
    %0 = vector.load %arg1[%c0, %c0_0] : memref<8x16xf32, #tpu.memory_space<vmem>>, vector<8x16xf32>
    %1 = vector.extract_strided_slice %0 {offsets = [0, 0], sizes = [8, 14], strides = [1, 1]} : vector<8x16xf32> to vector<8x14xf32>
    %cst = arith.constant 0.000000e+00 : f32
    %2 = vector.broadcast %cst : f32 to vector<8x14xf32>
    %3 = arith.subf %2, %1 : vector<8x14xf32>
    %4 = vector.extract_strided_slice %0 {offsets = [0, 2], sizes = [8, 14], strides = [1, 1]} : vector<8x16xf32> to vector<8x14xf32>
    %5 = arith.addf %3, %4 : vector<8x14xf32>
    %cst_1 = arith.constant 5.000000e+01 : f32
    %6 = vector.broadcast %cst_1 : f32 to vector<8x14xf32>
    %7 = arith.mulf %5, %6 : vector<8x14xf32>
    %c0_2 = arith.constant 0 : index
    %c0_3 = arith.constant 0 : index
    %8 = vector.load %arg2[%c0_2, %c0_3] : memref<8x14xf32, #tpu.memory_space<vmem>>, vector<8x14xf32>
    tpu.vector_store %arg2[%c0_2, %c0_3], %7 {strides = array<i32>} : memref<8x14xf32, #tpu.memory_space<vmem>>, vector<8x14xf32>,
    return
  }
  func.func @transform_0(%arg0: i32) -> (i32, i32) {
    %c0_i32 = arith.constant 0 : i32
    %c0_i32_0 = arith.constant 0 : i32
    return %arg0, %c0_i32 : i32, i32
  }
  func.func @transform_1(%arg0: i32) -> (i32, i32) {
    %c0_i32 = arith.constant 0 : i32
    %c0_i32_0 = arith.constant 0 : i32
    return %arg0, %c0_i32 : i32, i32
  }
}

</mosaic_0001>

<llo_original>
// kernel: _conv1d_derivative_pallas.1
$region0: #{_conv1d_derivative_pallas.1}
  #allocation0 [shape = 'u32[]', space=smem, size = 0x4, offset = 0x4, fixed_abs, tag = 'smem constant byte address 0x4 - core index']
  #allocation1 [shape = 'u32[72,128]{1,0:T(1,128)}', space=vmem, size = 0x9000, scoped, tag = 'internal scratch']
  %s0 = inlined_call_operand.hbm [shape: f32[2,16], index: 0, kind: input, shape index: {}]
  %s1 = inlined_call_operand.hbm [shape: f32[2,14], index: 1, kind: output, shape index: {}]
  %s2 = sld [smem:[#allocation0]]
  $region18: #{_conv1d_derivative_pallas.1} parent=0
    _
  %s4 = ssub.s32 1, %s2
  %s5 = scalar_select 0, %s4, %s2
  $region1: #{_conv1d_derivative_pallas.1} parent=0
    #allocation2 [shape = 'u8[4096]{0}', space=vmem, size = 0x1000, scoped, tag = 'input window, operand 0, single buffered']
    #allocation3 [shape = 's32[1]{0}', space=sflag, size = 0x4, scoped, tag = 'scoped memory for _conv1d_derivative_pallas.1']
    #allocation4 [shape = 's32[1]{0}', space=sflag, size = 0x4, scoped, tag = 'scoped memory for _conv1d_derivative_pallas.1']
    #allocation5 [shape = 'u8[4096]{0}', space=vmem, size = 0x1000, scoped, tag = 'output window, operand 0, single buffered']
    %6 = vsyncpa [#allocation3], 0
    %7 = vsyncpa [#allocation4], 0
    // Predicated region
    $region2: #{_conv1d_derivative_pallas.1} parent=1 // pred_check
      _
    $region3: #{_conv1d_derivative_pallas.1} parent=1 // pred_check_branch
      %9 = sbr.rel (0) target = $region5
    $region4: #{_conv1d_derivative_pallas.1} parent=1 // pred_region
      %11 = vsyncadd [#allocation3], 96
      %s12 = sshll.u32 %s0, 4
      %s13 = int_to_ptr.hbm [resolvable:$true] %s12
      %s14 = sshll.u32 [#allocation2], 4
      %s15 = int_to_ptr.vmem [resolvable:$true] %s14
      %20 = dma.hbm_to_vmem [thread:$0]  %s13, 32, %s15, [#allocation3], 32, 32, 2
    $region5: #{_conv1d_derivative_pallas.1} parent=1 // pred_fallthru
      _
    // Predicated region
    $region6: #{_conv1d_derivative_pallas.1} parent=1 // pred_check
      _
    $region7: #{_conv1d_derivative_pallas.1} parent=1 // pred_check_branch
      %22 = sbr.rel (0) target = $region9
    $region8: #{_conv1d_derivative_pallas.1} parent=1 // pred_region
      %24 = dma.done [#allocation3], 128
    $region9: #{_conv1d_derivative_pallas.1} parent=1 // pred_fallthru
      _
    %v25 = vld [vmem:[#allocation2] sm:$0xff]
    %v26 = vsub.f32 0.0, %v25
    %28 = vrot.lane.b32.xlu0 %v25, 126
    %v29 = vpop.permute.xlu0 %28
    %v31 = vadd.f32 %v26, %v29
    %v32 = vmul.f32 %v31, 50.0
    %vm33 = vcmask 113664
    %34 = vst.msk [vmem:[#allocation5] sm:$0xff] %vm33, %v32
    // Predicated region
    $region10: #{_conv1d_derivative_pallas.1} parent=1 // pred_check
      _
    $region11: #{_conv1d_derivative_pallas.1} parent=1 // pred_check_branch
      %36 = sbr.rel (0) target = $region13
    $region12: #{_conv1d_derivative_pallas.1} parent=1 // pred_region
      %38 = vsyncadd [#allocation4], 96
      %s39 = sshll.u32 [#allocation5], 4
      %s40 = int_to_ptr.vmem [resolvable:$true] %s39
      %s41 = sshll.u32 %s1, 4
      %s42 = int_to_ptr.hbm [resolvable:$true] %s41
      %47 = dma.vmem_to_hbm [thread:$0]  %s40, 32, %s42, [#allocation4], 32, 32, 2
    $region13: #{_conv1d_derivative_pallas.1} parent=1 // pred_fallthru
      _
    // Predicated region
    $region14: #{_conv1d_derivative_pallas.1} parent=1 // pred_check
      _
    $region15: #{_conv1d_derivative_pallas.1} parent=1 // pred_check_branch
      %49 = sbr.rel (0) target = $region17
    $region16: #{_conv1d_derivative_pallas.1} parent=1 // pred_region
      %51 = dma.done [#allocation4], 128
    $region17: #{_conv1d_derivative_pallas.1} parent=1 // pred_fallthru
      _
    %52 = vsyncpa [#allocation3], 1
    %53 = vsyncpa [#allocation4], 1

</llo_original>
